<compile_context>
chip_gen: v5e
topology: v5e:2x2
jax: 0.10.0
libtpu: 0.0.40
codegen_flags: <defaults>
</compile_context>

<pallas_src>
import functools

import jax
import jax.numpy as jnp
from jax.experimental import pallas as pl
from jax.experimental.pallas import tpu as pltpu

POWER = 2        # matches Normalize(power=2) default
EPS = 1e-07

_TARGET_BLOCK_BYTES = 4 * 1024 * 1024   # ~4 MiB of in-dtype HBM traffic per step
_MIN_GRID_STEPS = 8                     # >=4 steps per TC on v7x; keeps pipelining


def _cdiv(a, b):
    return -(-a // b)


def _round_up(v, m):
    return ((v + m - 1) // m) * m


def _round_down(v, m):
    return (v // m) * m


def _vmem_capacity_bytes():
    """Trace-time VMEM capacity query; conservative v7x fallback."""
    try:
        info = pltpu.get_tpu_info()
        cap = getattr(info, "vmem_capacity_bytes", None)
        if cap:
            return int(cap)
    except Exception:
        pass
    return 64 * 1024 * 1024   # v7x physical — the smallest across v5e/v6e/v7x


def _normalize_kernel(x_ref, o_ref, *, power):
    # Hot path: elementwise pow + per-row reduction + elementwise scale in VMEM.
    x = x_ref[...]
    xf = x if x.dtype == jnp.float32 else x.astype(jnp.float32)
    if power == 2:
        s = jnp.sum(xf * xf, axis=1, keepdims=True)
        norm = jnp.sqrt(s)
    else:
        # Matches torch.pow semantics (no abs) — NaN for negative base with
        # fractional power, same as the reference module.
        s = jnp.sum(jnp.power(xf, power), axis=1, keepdims=True)
        norm = jnp.power(s, 1.0 / power)
    # eps is added to the norm BEFORE inversion (matches x / (norm + eps)).
    inv = pl.reciprocal(norm + EPS, approx=False)
    if x.dtype == jnp.float32:
        o_ref[...] = xf * inv
    else:
        # Scale in the input dtype: avoids a second full-tile f32 temp for
        # narrow dtypes (output is narrow anyway).
        o_ref[...] = x * inv.astype(x.dtype)


def normalize(x, power=POWER):
    """L_p-normalize each row of x (N, D), reproducing PyTorch Normalize.forward."""
    n, d = x.shape
    itemsize = jnp.dtype(x.dtype).itemsize
    # Sublane packing: 8 rows for 4B, 16 for 2B, 32 for 1B dtypes.
    sublane = max(8, 32 // itemsize)

    vmem_cap = _vmem_capacity_bytes()
    vmem_usable = (vmem_cap * 3) // 4    # headroom for compiler internals

    # Per-row VMEM: double-buffered in + out blocks (in-dtype) + one f32 temp.
    per_row_bytes = d * (4 * itemsize + 4)

    rows_from_target = max(1, _TARGET_BLOCK_BYTES // max(1, d * itemsize))
    rows_from_vmem = max(1, vmem_usable // max(1, per_row_bytes))
    row_tile = max(sublane, _round_down(min(rows_from_target, rows_from_vmem), sublane))

    # Keep >= _MIN_GRID_STEPS grid steps when N is large enough so both v7x
    # TensorCores get multiple pipelined steps each (and single-TC chips keep
    # prefetch/writeback overlap).
    if n >= _MIN_GRID_STEPS * sublane:
        row_tile = min(row_tile, _round_up(_cdiv(n, _MIN_GRID_STEPS), sublane))

    if row_tile >= n:
        # Single block: row dim equal to the full array dim is always legal,
        # even when N is not a sublane multiple.
        row_tile = n
    grid_steps = _cdiv(n, row_tile)

    vmem_limit = int(min(vmem_cap,
                         max(32 * 1024 * 1024,
                             per_row_bytes * row_tile + (2 << 20))))

    kernel = functools.partial(_normalize_kernel, power=power)
    out = pl.pallas_call(
        kernel,
        out_shape=jax.ShapeDtypeStruct((n, d), x.dtype),
        grid_spec=pltpu.PrefetchScalarGridSpec(
            num_scalar_prefetch=0,
            grid=(grid_steps,),
            # Last dim = full D (no pad/slice round-trips); last N-block may be
            # partial (OOB rows never influence valid rows: reduction is per-row).
            in_specs=[pl.BlockSpec((row_tile, d), lambda i: (i, 0))],
            out_specs=pl.BlockSpec((row_tile, d), lambda i: (i, 0)),
        ),
        compiler_params=pltpu.CompilerParams(
            dimension_semantics=("parallel",),
            vmem_limit_bytes=vmem_limit),
    )(x)
    return out


def _reference(x, power=POWER):
    norm = jnp.power(jnp.sum(jnp.power(x, power), axis=1, keepdims=True),
                     1.0 / power)
    return x / (norm + EPS)


if __name__ == "__main__":
    key = jax.random.PRNGKey(0)
    k1, k2 = jax.random.split(key)

    # Small shape consistent with the module: batch=8 embedding vectors of dim 32.
    x = jax.random.normal(k1, (8, 32), dtype=jnp.float32)
    out = normalize(x)
    jax.block_until_ready(out)
    ref = _reference(x)
    assert out.shape == x.shape and out.dtype == x.dtype
    assert jnp.allclose(out, ref, atol=1e-5, rtol=1e-5), "mismatch vs reference"

    # Awkward shape exercising the partial-block (N) and un-aligned-D path.
    x2 = jax.random.normal(k2, (10, 200), dtype=jnp.float32)
    out2 = normalize(x2)
    jax.block_until_ready(out2)
    ref2 = _reference(x2)
    assert out2.shape == x2.shape and out2.dtype == x2.dtype
    assert jnp.allclose(out2, ref2, atol=1e-5, rtol=1e-5), "mismatch vs reference (ragged)"

    print("KERNEL_OK")
</pallas_src>

<mosaic_0001>
module attributes {stable_mosaic.version = 11 : i64} {
  func.func @_normalize_kernel(%arg0: i32, %arg1: memref<8x32xf32, #tpu.memory_space<vmem>>, %arg2: memref<8x32xf32, #tpu.memory_space<vmem>>) attributes {dimension_semantics = [#tpu.dimension_semantics<parallel>], iteration_bounds = array<i64: 1>, scalar_prefetch = 0 : i64, scratch_operands = 0 : i64, tpu.core_type = #tpu.core_type<tc>, window_params = [{transform_indices = @transform_0, window_bounds = array<i64: 8, 32>}, {transform_indices = @transform_1, window_bounds = array<i64: 8, 32>}]} {
    %c0 = arith.constant 0 : index
    %c0_0 = arith.constant 0 : index
    %0 = vector.load %arg1[%c0, %c0_0] : memref<8x32xf32, #tpu.memory_space<vmem>>, vector<8x32xf32>
    %1 = arith.mulf %0, %0 : vector<8x32xf32>
    %cst = arith.constant dense<0.000000e+00> : vector<8xf32>
    %2 = vector.multi_reduction <add>, %1, %cst [1] : vector<8x32xf32> to vector<8xf32>
    %3 = vector.shape_cast %2 : vector<8xf32> to vector<8x1xf32>
    %4 = math.sqrt %3 : vector<8x1xf32>
    %cst_1 = arith.constant 1.000000e-07 : f32
    %5 = vector.broadcast %cst_1 : f32 to vector<8x1xf32>
    %6 = arith.addf %4, %5 : vector<8x1xf32>
    %7 = tpu.reciprocal %6 : vector<8x1xf32> -> vector<8x1xf32>
    %8 = vector.broadcast %7 : vector<8x1xf32> to vector<8x32xf32>
    %9 = arith.mulf %0, %8 : vector<8x32xf32>
    %c0_2 = arith.constant 0 : index
    %c0_3 = arith.constant 0 : index
    %10 = vector.load %arg2[%c0_2, %c0_3] : memref<8x32xf32, #tpu.memory_space<vmem>>, vector<8x32xf32>
    tpu.vector_store %arg2[%c0_2, %c0_3], %9 {strides = array<i32>} : memref<8x32xf32, #tpu.memory_space<vmem>>, vector<8x32xf32>,
    return
  }
  func.func @transform_0(%arg0: i32) -> (i32, i32) {
    %c0_i32 = arith.constant 0 : i32
    %c0_i32_0 = arith.constant 0 : i32
    return %arg0, %c0_i32 : i32, i32
  }
  func.func @transform_1(%arg0: i32) -> (i32, i32) {
    %c0_i32 = arith.constant 0 : i32
    %c0_i32_0 = arith.constant 0 : i32
    return %arg0, %c0_i32 : i32, i32
  }
}

</mosaic_0001>

<llo_original>
// kernel: tpu_custom_call.1
$region0: #{tpu_custom_call.1}
  #allocation0 [shape = 'u32[]', space=smem, size = 0x4, offset = 0x4, fixed_abs, tag = 'smem constant byte address 0x4 - core index']
  #allocation1 [shape = 'u32[72,128]{1,0:T(1,128)}', space=vmem, size = 0x9000, scoped, tag = 'internal scratch']
  %s0 = inlined_call_operand.hbm [shape: f32[8,32], index: 0, kind: input, shape index: {}]
  %s1 = inlined_call_operand.hbm [shape: f32[8,32], index: 1, kind: output, shape index: {}]
  %s2 = sld [smem:[#allocation0]]
  $region18: #{tpu_custom_call.1} parent=0
    _
  %s4 = ssub.s32 1, %s2
  %s5 = scalar_select 0, %s4, %s2
  $region1: #{tpu_custom_call.1} parent=0
    #allocation2 [shape = 'u8[4096]{0}', space=vmem, size = 0x1000, scoped, tag = 'input window, operand 0, single buffered']
    #allocation3 [shape = 's32[1]{0}', space=sflag, size = 0x4, scoped, tag = 'scoped memory for tpu_custom_call.1']
    #allocation4 [shape = 's32[1]{0}', space=sflag, size = 0x4, scoped, tag = 'scoped memory for tpu_custom_call.1']
    #allocation5 [shape = 'u8[4096]{0}', space=vmem, size = 0x1000, scoped, tag = 'output window, operand 0, single buffered']
    %6 = vsyncpa [#allocation3], 0
    %7 = vsyncpa [#allocation4], 0
    // Predicated region
    $region2: #{tpu_custom_call.1} parent=1 // pred_check
      _
    $region3: #{tpu_custom_call.1} parent=1 // pred_check_branch
      %9 = sbr.rel (0) target = $region5
    $region4: #{tpu_custom_call.1} parent=1 // pred_region
      %11 = vsyncadd [#allocation3], 0
      %s13 = sshll.u32 %s0, 4
      %s14 = int_to_ptr.hbm [resolvable:$true] %s13
      %s15 = sshll.u32 [#allocation2], 4
      %s16 = int_to_ptr.vmem [resolvable:$true] %s15
      %18 = dma.hbm_to_vmem [thread:$0]  %s14, 128, %s16, [#allocation3]
    $region5: #{tpu_custom_call.1} parent=1 // pred_fallthru
      _
    // Predicated region
    $region6: #{tpu_custom_call.1} parent=1 // pred_check
      _
    $region7: #{tpu_custom_call.1} parent=1 // pred_check_branch
      %20 = sbr.rel (0) target = $region9
    $region8: #{tpu_custom_call.1} parent=1 // pred_region
      %22 = dma.done [#allocation3], 128
    $region9: #{tpu_custom_call.1} parent=1 // pred_fallthru
      _
    %v23 = vld [vmem:[#allocation2] sm:$0xff]
    %v24 = vmul.f32 %v23, %v23
    %vm25 = vcmask 261120
    %v26 = vsel %vm25, %v24, 0.0
    %27 = vadd.xlane.f32.xlu0 %v26
    %v28 = vpop.xlane.xlu0 %27
    %v29 = vrsqrt.pop %v28
    %v30 = vmul.f32 %v29, %v28
    %v31 = vmul.f32 %v30, %v29
    %v32 = vmul.f32 0.5, %v31
    %v33 = vsub.f32 1.5, %v32
    %v34 = vmul.f32 %v29, %v33
    %v35 = vmul.f32 %v28, %v34
    %vm36 = vcmp.eq.f32.partialorder %v28, inf
    %v37 = vsel %vm36, %v28, %v35
    %vm38 = vcmp.eq.f32.partialorder %v28, 0.0
    %v39 = vand.u32 %v28, 2147483648
    %v40 = vsel %vm38, %v39, %v37
    %v41 = vadd.f32 %v40, 1e-07
    %v42 = vrcp.pop %v41
    %v43 = vmul.f32 %v41, %v42
    %v44 = vsub.f32 1.0, %v43
    %v45 = vmul.f32 %v42, %v44
    %v46 = vadd.f32 %v42, %v45
    %vm47 = vweird.f32 %v41
    %vm48 = vweird.f32 %v42
    %vm49 = vmor %vm47, %vm48
    %v50 = vsel %vm49, %v42, %v46
    %v51 = vand.u32 2147483647, %v41
    %vm52 = vcmp.eq.f32.partialorder %v51, 8.507059e+37
    %v53 = vand.u32 %v41, 2147483648
    %v54 = vor.u32 1.1754944e-38, %v53
    %v55 = vsel %vm52, %v54, %v50
    %v56 = vmul.f32 %v23, %v55
    %57 = vst.msk [vmem:[#allocation5] sm:$0xff] %vm25, %v56
    // Predicated region
    $region10: #{tpu_custom_call.1} parent=1 // pred_check
      _
    $region11: #{tpu_custom_call.1} parent=1 // pred_check_branch
      %59 = sbr.rel (0) target = $region13
    $region12: #{tpu_custom_call.1} parent=1 // pred_region
      %61 = vsyncadd [#allocation4], 0
      %s63 = sshll.u32 [#allocation5], 4
      %s64 = int_to_ptr.vmem [resolvable:$true] %s63
      %s65 = sshll.u32 %s1, 4
      %s66 = int_to_ptr.hbm [resolvable:$true] %s65
      %68 = dma.vmem_to_hbm [thread:$0]  %s64, 128, %s66, [#allocation4]
    $region13: #{tpu_custom_call.1} parent=1 // pred_fallthru
      _
    // Predicated region
    $region14: #{tpu_custom_call.1} parent=1 // pred_check
      _
    $region15: #{tpu_custom_call.1} parent=1 // pred_check_branch
      %70 = sbr.rel (0) target = $region17
    $region16: #{tpu_custom_call.1} parent=1 // pred_region
      %72 = dma.done [#allocation4], 128
    $region17: #{tpu_custom_call.1} parent=1 // pred_fallthru
      _
    %73 = vsyncpa [#allocation3], 1
    %74 = vsyncpa [#allocation4], 1

</llo_original>
